<compile_context>
chip_gen: v6e
topology: v6e:2x2x1
jax: 0.10.0
libtpu: 0.0.40
codegen_flags: <defaults>
</compile_context>

<pallas_src>
import jax
import jax.numpy as jnp
from jax.experimental import pallas as pl
from jax.experimental.pallas import tpu as pltpu


def gru_recurrence_kernel(xg_ref, w_h_ref, b_hn_ref, w_fc_ref, b_fc_ref, out_ref):
    """Runs the full T-step GRU recurrence + final fc in one invocation.

    xg_ref   : (T, B, 3H)  pre-projected input gates, time-major
                           [x@W_ir + b_ir + b_hr, x@W_iz + b_iz + b_hz, x@W_in + b_in]
    w_h_ref  : (H, 3H)     concat(W_hr, W_hz, W_hn), pre-transposed
    b_hn_ref : (1, H)      b_hn (must stay inside the r-gated term)
    w_fc_ref : (H, O), b_fc_ref : (1, O)
    out_ref  : (B, O)      fc(h_T), i.e. fc(out[:, -1, :])
    """
    T, B, three_h = xg_ref.shape
    H = three_h // 3

    # Hoist loop-invariant weight/bias loads (tiny at these shapes; they stay
    # vreg-resident across the unrolled loop).
    w_h = w_h_ref[...]
    b_hn = b_hn_ref[...]

    def step(t, h):
        gx = xg_ref[t]                                            # (B, 3H)
        gh = jnp.dot(h, w_h, preferred_element_type=jnp.float32)  # (B, 3H)
        r = jax.nn.sigmoid(gx[:, :H] + gh[:, :H])
        z = jax.nn.sigmoid(gx[:, H:2 * H] + gh[:, H:2 * H])
        n = jnp.tanh(gx[:, 2 * H:] + r * (gh[:, 2 * H:] + b_hn))
        return n + z * (h - n)                                    # == (1-z)*n + z*h

    h_last = jax.lax.fori_loop(0, T, step,
                               jnp.zeros((B, H), jnp.float32),
                               unroll=True)

    out_ref[...] = (jnp.dot(h_last, w_fc_ref[...],
                            preferred_element_type=jnp.float32)
                    + b_fc_ref[...])


@jax.jit
def gru_model_forward(x, params):
    """x: (B, T, I) float32 -> (B, O) float32, matching GRUModel.forward."""
    B, T, I = x.shape
    H = params["w_h"].shape[0]
    O = params["w_fc"].shape[1]

    # Hoisted input projection for ALL timesteps: one (B*T, I) x (I, 3H)
    # matmul with the fuseable biases folded in, then laid out time-major so
    # the kernel reads one contiguous (B, 3H) slab per step.
    xg = x.reshape(B * T, I) @ params["w_i"] + params["b_x"]      # (B*T, 3H)
    xg = xg.reshape(B, T, 3 * H).transpose(1, 0, 2)               # (T, B, 3H)

    vmem = pl.BlockSpec(memory_space=pltpu.MemorySpace.VMEM)      # whole-array blocks
    return pl.pallas_call(
        gru_recurrence_kernel,
        out_shape=jax.ShapeDtypeStruct((B, O), jnp.float32),
        in_specs=[vmem] * 5,
        out_specs=vmem,
    )(xg, params["w_h"], params["b_hn"], params["w_fc"], params["b_fc"])


def init_params(key, input_size, hidden_size, output_size):
    """PyTorch-style U(-1/sqrt(H), 1/sqrt(H)) init, stored fused & pre-transposed."""
    ks = jax.random.split(key, 14)
    s = hidden_size ** -0.5

    def u(k, shape):
        return jax.random.uniform(k, shape, jnp.float32, -s, s)

    w_ir, w_iz, w_in_ = (u(ks[0], (input_size, hidden_size)),
                         u(ks[1], (input_size, hidden_size)),
                         u(ks[2], (input_size, hidden_size)))
    w_hr, w_hz, w_hn = (u(ks[3], (hidden_size, hidden_size)),
                        u(ks[4], (hidden_size, hidden_size)),
                        u(ks[5], (hidden_size, hidden_size)))
    b_ir, b_iz, b_in_ = (u(ks[6], (1, hidden_size)),
                         u(ks[7], (1, hidden_size)),
                         u(ks[8], (1, hidden_size)))
    b_hr, b_hz, b_hn = (u(ks[9], (1, hidden_size)),
                        u(ks[10], (1, hidden_size)),
                        u(ks[11], (1, hidden_size)))
    return {
        # Fused / pre-transposed storage (gate order r, z, n — matches nn.GRU):
        "w_i": jnp.concatenate([w_ir, w_iz, w_in_], axis=1),              # (I, 3H)
        "w_h": jnp.concatenate([w_hr, w_hz, w_hn], axis=1),               # (H, 3H)
        "b_x": jnp.concatenate([b_ir + b_hr, b_iz + b_hz, b_in_], axis=1),  # (1, 3H)
        "b_hn": b_hn,                                                     # (1, H)
        "w_fc": u(ks[12], (hidden_size, output_size)),                    # (H, O)
        "b_fc": u(ks[13], (1, output_size)),                              # (1, O)
    }


def ref_forward(x, params):
    """Pure-JAX reference of the same forward pass (PyTorch nn.GRU + fc semantics)."""
    B, T, _ = x.shape
    H = params["w_h"].shape[0]
    h = jnp.zeros((B, H), jnp.float32)
    for t in range(T):
        gx = x[:, t, :] @ params["w_i"] + params["b_x"]
        gh = h @ params["w_h"]
        r = jax.nn.sigmoid(gx[:, :H] + gh[:, :H])
        z = jax.nn.sigmoid(gx[:, H:2 * H] + gh[:, H:2 * H])
        n = jnp.tanh(gx[:, 2 * H:] + r * (gh[:, 2 * H:] + params["b_hn"]))
        h = (1.0 - z) * n + z * h
    return h @ params["w_fc"] + params["b_fc"]


if __name__ == "__main__":
    batch, time_steps = 2, 8
    input_size, hidden_size, output_size = 8, 32, 4

    key = jax.random.PRNGKey(0)
    k_x, k_p = jax.random.split(key)
    x = jax.random.normal(k_x, (batch, time_steps, input_size), jnp.float32)
    params = init_params(k_p, input_size, hidden_size, output_size)

    out = jax.block_until_ready(gru_model_forward(x, params))
    ref = ref_forward(x, params)

    assert out.shape == (batch, output_size)
    assert jnp.allclose(out, ref, atol=1e-4, rtol=1e-4), "mismatch vs reference"

    print("KERNEL_OK")
</pallas_src>

<mosaic_0001>
module attributes {stable_mosaic.version = 11 : i64} {
  func.func @gru_recurrence_kernel(%arg0: memref<8x2x96xf32, #tpu.memory_space<vmem>>, %arg1: memref<32x96xf32, #tpu.memory_space<vmem>>, %arg2: memref<1x32xf32, #tpu.memory_space<vmem>>, %arg3: memref<32x4xf32, #tpu.memory_space<vmem>>, %arg4: memref<1x4xf32, #tpu.memory_space<vmem>>, %arg5: memref<2x4xf32, #tpu.memory_space<vmem>>) attributes {dimension_semantics = [], scalar_prefetch = 0 : i64, scratch_operands = 0 : i64, tpu.core_type = #tpu.core_type<tc>} {
    %c0 = arith.constant 0 : index
    %c0_0 = arith.constant 0 : index
    %0 = vector.load %arg1[%c0, %c0_0] : memref<32x96xf32, #tpu.memory_space<vmem>>, vector<32x96xf32>
    %c0_1 = arith.constant 0 : index
    %c0_2 = arith.constant 0 : index
    %1 = vector.load %arg2[%c0_1, %c0_2] : memref<1x32xf32, #tpu.memory_space<vmem>>, vector<1x32xf32>
    %cst = arith.constant 0.000000e+00 : f32
    %2 = vector.broadcast %cst : f32 to vector<2x32xf32>
    %c0_i32 = arith.constant 0 : i32
    %3 = arith.index_cast %c0_i32 : i32 to index
    %c0_3 = arith.constant 0 : index
    %c0_4 = arith.constant 0 : index
    %4 = vector.load %arg0[%3, %c0_3, %c0_4] : memref<8x2x96xf32, #tpu.memory_space<vmem>>, vector<1x2x96xf32>
    %5 = vector.shape_cast %4 : vector<1x2x96xf32> to vector<2x96xf32>
    %cst_5 = arith.constant dense<0.000000e+00> : vector<2x96xf32>
    %6 = tpu.matmul %2, %0, %cst_5 {dimension_numbers = #tpu.dot_dimension_numbers<[1], [0], [0], [1], [0, 0, 1, 1], [], []>} : vector<2x32xf32>, vector<32x96xf32>, vector<2x96xf32> -> vector<2x96xf32>
    %7 = vector.extract_strided_slice %5 {offsets = [0, 0], sizes = [2, 32], strides = [1, 1]} : vector<2x96xf32> to vector<2x32xf32>
    %8 = vector.extract_strided_slice %6 {offsets = [0, 0], sizes = [2, 32], strides = [1, 1]} : vector<2x96xf32> to vector<2x32xf32>
    %9 = arith.addf %7, %8 : vector<2x32xf32>
    %10 = arith.negf %9 : vector<2x32xf32>
    %11 = math.exp %10 : vector<2x32xf32>
    %cst_6 = arith.constant 1.000000e+00 : f32
    %12 = vector.broadcast %cst_6 : f32 to vector<2x32xf32>
    %13 = arith.addf %12, %11 : vector<2x32xf32>
    %14 = arith.divf %12, %13 : vector<2x32xf32>
    %15 = vector.extract_strided_slice %5 {offsets = [0, 32], sizes = [2, 32], strides = [1, 1]} : vector<2x96xf32> to vector<2x32xf32>
    %16 = vector.extract_strided_slice %6 {offsets = [0, 32], sizes = [2, 32], strides = [1, 1]} : vector<2x96xf32> to vector<2x32xf32>
    %17 = arith.addf %15, %16 : vector<2x32xf32>
    %18 = arith.negf %17 : vector<2x32xf32>
    %19 = math.exp %18 : vector<2x32xf32>
    %cst_7 = arith.constant 1.000000e+00 : f32
    %20 = vector.broadcast %cst_7 : f32 to vector<2x32xf32>
    %21 = arith.addf %20, %19 : vector<2x32xf32>
    %22 = arith.divf %20, %21 : vector<2x32xf32>
    %23 = vector.extract_strided_slice %5 {offsets = [0, 64], sizes = [2, 32], strides = [1, 1]} : vector<2x96xf32> to vector<2x32xf32>
    %24 = vector.extract_strided_slice %6 {offsets = [0, 64], sizes = [2, 32], strides = [1, 1]} : vector<2x96xf32> to vector<2x32xf32>
    %25 = vector.broadcast %1 : vector<1x32xf32> to vector<2x32xf32>
    %26 = arith.addf %24, %25 : vector<2x32xf32>
    %27 = arith.mulf %14, %26 : vector<2x32xf32>
    %28 = arith.addf %23, %27 : vector<2x32xf32>
    %29 = math.tanh %28 : vector<2x32xf32>
    %30 = arith.subf %2, %29 : vector<2x32xf32>
    %31 = arith.mulf %22, %30 : vector<2x32xf32>
    %32 = arith.addf %29, %31 : vector<2x32xf32>
    %c1_i32 = arith.constant 1 : i32
    %33 = arith.index_cast %c1_i32 : i32 to index
    %c0_8 = arith.constant 0 : index
    %c0_9 = arith.constant 0 : index
    %34 = vector.load %arg0[%33, %c0_8, %c0_9] : memref<8x2x96xf32, #tpu.memory_space<vmem>>, vector<1x2x96xf32>
    %35 = vector.shape_cast %34 : vector<1x2x96xf32> to vector<2x96xf32>
    %cst_10 = arith.constant dense<0.000000e+00> : vector<2x96xf32>
    %36 = tpu.matmul %32, %0, %cst_10 {dimension_numbers = #tpu.dot_dimension_numbers<[1], [0], [0], [1], [0, 0, 1, 1], [], []>} : vector<2x32xf32>, vector<32x96xf32>, vector<2x96xf32> -> vector<2x96xf32>
    %37 = vector.extract_strided_slice %35 {offsets = [0, 0], sizes = [2, 32], strides = [1, 1]} : vector<2x96xf32> to vector<2x32xf32>
    %38 = vector.extract_strided_slice %36 {offsets = [0, 0], sizes = [2, 32], strides = [1, 1]} : vector<2x96xf32> to vector<2x32xf32>
    %39 = arith.addf %37, %38 : vector<2x32xf32>
    %40 = arith.negf %39 : vector<2x32xf32>
    %41 = math.exp %40 : vector<2x32xf32>
    %cst_11 = arith.constant 1.000000e+00 : f32
    %42 = vector.broadcast %cst_11 : f32 to vector<2x32xf32>
    %43 = arith.addf %42, %41 : vector<2x32xf32>
    %44 = arith.divf %42, %43 : vector<2x32xf32>
    %45 = vector.extract_strided_slice %35 {offsets = [0, 32], sizes = [2, 32], strides = [1, 1]} : vector<2x96xf32> to vector<2x32xf32>
    %46 = vector.extract_strided_slice %36 {offsets = [0, 32], sizes = [2, 32], strides = [1, 1]} : vector<2x96xf32> to vector<2x32xf32>
    %47 = arith.addf %45, %46 : vector<2x32xf32>
    %48 = arith.negf %47 : vector<2x32xf32>
    %49 = math.exp %48 : vector<2x32xf32>
    %cst_12 = arith.constant 1.000000e+00 : f32
    %50 = vector.broadcast %cst_12 : f32 to vector<2x32xf32>
    %51 = arith.addf %50, %49 : vector<2x32xf32>
    %52 = arith.divf %50, %51 : vector<2x32xf32>
    %53 = vector.extract_strided_slice %35 {offsets = [0, 64], sizes = [2, 32], strides = [1, 1]} : vector<2x96xf32> to vector<2x32xf32>
    %54 = vector.extract_strided_slice %36 {offsets = [0, 64], sizes = [2, 32], strides = [1, 1]} : vector<2x96xf32> to vector<2x32xf32>
    %55 = vector.broadcast %1 : vector<1x32xf32> to vector<2x32xf32>
    %56 = arith.addf %54, %55 : vector<2x32xf32>
    %57 = arith.mulf %44, %56 : vector<2x32xf32>
    %58 = arith.addf %53, %57 : vector<2x32xf32>
    %59 = math.tanh %58 : vector<2x32xf32>
    %60 = arith.subf %32, %59 : vector<2x32xf32>
    %61 = arith.mulf %52, %60 : vector<2x32xf32>
    %62 = arith.addf %59, %61 : vector<2x32xf32>
    %c2_i32 = arith.constant 2 : i32
    %63 = arith.index_cast %c2_i32 : i32 to index
    %c0_13 = arith.constant 0 : index
    %c0_14 = arith.constant 0 : index
    %64 = vector.load %arg0[%63, %c0_13, %c0_14] : memref<8x2x96xf32, #tpu.memory_space<vmem>>, vector<1x2x96xf32>
    %65 = vector.shape_cast %64 : vector<1x2x96xf32> to vector<2x96xf32>
    %cst_15 = arith.constant dense<0.000000e+00> : vector<2x96xf32>
    %66 = tpu.matmul %62, %0, %cst_15 {dimension_numbers = #tpu.dot_dimension_numbers<[1], [0], [0], [1], [0, 0, 1, 1], [], []>} : vector<2x32xf32>, vector<32x96xf32>, vector<2x96xf32> -> vector<2x96xf32>
    %67 = vector.extract_strided_slice %65 {offsets = [0, 0], sizes = [2, 32], strides = [1, 1]} : vector<2x96xf32> to vector<2x32xf32>
    %68 = vector.extract_strided_slice %66 {offsets = [0, 0], sizes = [2, 32], strides = [1, 1]} : vector<2x96xf32> to vector<2x32xf32>
    %69 = arith.addf %67, %68 : vector<2x32xf32>
    %70 = arith.negf %69 : vector<2x32xf32>
    %71 = math.exp %70 : vector<2x32xf32>
    %cst_16 = arith.constant 1.000000e+00 : f32
    %72 = vector.broadcast %cst_16 : f32 to vector<2x32xf32>
    %73 = arith.addf %72, %71 : vector<2x32xf32>
    %74 = arith.divf %72, %73 : vector<2x32xf32>
    %75 = vector.extract_strided_slice %65 {offsets = [0, 32], sizes = [2, 32], strides = [1, 1]} : vector<2x96xf32> to vector<2x32xf32>
    %76 = vector.extract_strided_slice %66 {offsets = [0, 32], sizes = [2, 32], strides = [1, 1]} : vector<2x96xf32> to vector<2x32xf32>
    %77 = arith.addf %75, %76 : vector<2x32xf32>
    %78 = arith.negf %77 : vector<2x32xf32>
    %79 = math.exp %78 : vector<2x32xf32>
    %cst_17 = arith.constant 1.000000e+00 : f32
    %80 = vector.broadcast %cst_17 : f32 to vector<2x32xf32>
    %81 = arith.addf %80, %79 : vector<2x32xf32>
    %82 = arith.divf %80, %81 : vector<2x32xf32>
    %83 = vector.extract_strided_slice %65 {offsets = [0, 64], sizes = [2, 32], strides = [1, 1]} : vector<2x96xf32> to vector<2x32xf32>
    %84 = vector.extract_strided_slice %66 {offsets = [0, 64], sizes = [2, 32], strides = [1, 1]} : vector<2x96xf32> to vector<2x32xf32>
    %85 = vector.broadcast %1 : vector<1x32xf32> to vector<2x32xf32>
    %86 = arith.addf %84, %85 : vector<2x32xf32>
    %87 = arith.mulf %74, %86 : vector<2x32xf32>
    %88 = arith.addf %83, %87 : vector<2x32xf32>
    %89 = math.tanh %88 : vector<2x32xf32>
    %90 = arith.subf %62, %89 : vector<2x32xf32>
    %91 = arith.mulf %82, %90 : vector<2x32xf32>
    %92 = arith.addf %89, %91 : vector<2x32xf32>
    %c3_i32 = arith.constant 3 : i32
    %93 = arith.index_cast %c3_i32 : i32 to index
    %c0_18 = arith.constant 0 : index
    %c0_19 = arith.constant 0 : index
    %94 = vector.load %arg0[%93, %c0_18, %c0_19] : memref<8x2x96xf32, #tpu.memory_space<vmem>>, vector<1x2x96xf32>
    %95 = vector.shape_cast %94 : vector<1x2x96xf32> to vector<2x96xf32>
    %cst_20 = arith.constant dense<0.000000e+00> : vector<2x96xf32>
    %96 = tpu.matmul %92, %0, %cst_20 {dimension_numbers = #tpu.dot_dimension_numbers<[1], [0], [0], [1], [0, 0, 1, 1], [], []>} : vector<2x32xf32>, vector<32x96xf32>, vector<2x96xf32> -> vector<2x96xf32>
    %97 = vector.extract_strided_slice %95 {offsets = [0, 0], sizes = [2, 32], strides = [1, 1]} : vector<2x96xf32> to vector<2x32xf32>
    %98 = vector.extract_strided_slice %96 {offsets = [0, 0], sizes = [2, 32], strides = [1, 1]} : vector<2x96xf32> to vector<2x32xf32>
    %99 = arith.addf %97, %98 : vector<2x32xf32>
    %100 = arith.negf %99 : vector<2x32xf32>
    %101 = math.exp %100 : vector<2x32xf32>
    %cst_21 = arith.constant 1.000000e+00 : f32
    %102 = vector.broadcast %cst_21 : f32 to vector<2x32xf32>
    %103 = arith.addf %102, %101 : vector<2x32xf32>
    %104 = arith.divf %102, %103 : vector<2x32xf32>
    %105 = vector.extract_strided_slice %95 {offsets = [0, 32], sizes = [2, 32], strides = [1, 1]} : vector<2x96xf32> to vector<2x32xf32>
    %106 = vector.extract_strided_slice %96 {offsets = [0, 32], sizes = [2, 32], strides = [1, 1]} : vector<2x96xf32> to vector<2x32xf32>
    %107 = arith.addf %105, %106 : vector<2x32xf32>
    %108 = arith.negf %107 : vector<2x32xf32>
    %109 = math.exp %108 : vector<2x32xf32>
    %cst_22 = arith.constant 1.000000e+00 : f32
    %110 = vector.broadcast %cst_22 : f32 to vector<2x32xf32>
    %111 = arith.addf %110, %109 : vector<2x32xf32>
    %112 = arith.divf %110, %111 : vector<2x32xf32>
    %113 = vector.extract_strided_slice %95 {offsets = [0, 64], sizes = [2, 32], strides = [1, 1]} : vector<2x96xf32> to vector<2x32xf32>
    %114 = vector.extract_strided_slice %96 {offsets = [0, 64], sizes = [2, 32], strides = [1, 1]} : vector<2x96xf32> to vector<2x32xf32>
    %115 = vector.broadcast %1 : vector<1x32xf32> to vector<2x32xf32>
    %116 = arith.addf %114, %115 : vector<2x32xf32>
    %117 = arith.mulf %104, %116 : vector<2x32xf32>
    %118 = arith.addf %113, %117 : vector<2x32xf32>
    %119 = math.tanh %118 : vector<2x32xf32>
    %120 = arith.subf %92, %119 : vector<2x32xf32>
    %121 = arith.mulf %112, %120 : vector<2x32xf32>
    %122 = arith.addf %119, %121 : vector<2x32xf32>
    %c4_i32 = arith.constant 4 : i32
    %123 = arith.index_cast %c4_i32 : i32 to index
    %c0_23 = arith.constant 0 : index
    %c0_24 = arith.constant 0 : index
    %124 = vector.load %arg0[%123, %c0_23, %c0_24] : memref<8x2x96xf32, #tpu.memory_space<vmem>>, vector<1x2x96xf32>
    %125 = vector.shape_cast %124 : vector<1x2x96xf32> to vector<2x96xf32>
    %cst_25 = arith.constant dense<0.000000e+00> : vector<2x96xf32>
    %126 = tpu.matmul %122, %0, %cst_25 {dimension_numbers = #tpu.dot_dimension_numbers<[1], [0], [0], [1], [0, 0, 1, 1], [], []>} : vector<2x32xf32>, vector<32x96xf32>, vector<2x96xf32> -> vector<2x96xf32>
    %127 = vector.extract_strided_slice %125 {offsets = [0, 0], sizes = [2, 32], strides = [1, 1]} : vector<2x96xf32> to vector<2x32xf32>
    %128 = vector.extract_strided_slice %126 {offsets = [0, 0], sizes = [2, 32], strides = [1, 1]} : vector<2x96xf32> to vector<2x32xf32>
    %129 = arith.addf %127, %128 : vector<2x32xf32>
    %130 = arith.negf %129 : vector<2x32xf32>
    %131 = math.exp %130 : vector<2x32xf32>
    %cst_26 = arith.constant 1.000000e+00 : f32
    %132 = vector.broadcast %cst_26 : f32 to vector<2x32xf32>
    %133 = arith.addf %132, %131 : vector<2x32xf32>
    %134 = arith.divf %132, %133 : vector<2x32xf32>
    %135 = vector.extract_strided_slice %125 {offsets = [0, 32], sizes = [2, 32], strides = [1, 1]} : vector<2x96xf32> to vector<2x32xf32>
    %136 = vector.extract_strided_slice %126 {offsets = [0, 32], sizes = [2, 32], strides = [1, 1]} : vector<2x96xf32> to vector<2x32xf32>
    %137 = arith.addf %135, %136 : vector<2x32xf32>
    %138 = arith.negf %137 : vector<2x32xf32>
    %139 = math.exp %138 : vector<2x32xf32>
    %cst_27 = arith.constant 1.000000e+00 : f32
    %140 = vector.broadcast %cst_27 : f32 to vector<2x32xf32>
    %141 = arith.addf %140, %139 : vector<2x32xf32>
    %142 = arith.divf %140, %141 : vector<2x32xf32>
    %143 = vector.extract_strided_slice %125 {offsets = [0, 64], sizes = [2, 32], strides = [1, 1]} : vector<2x96xf32> to vector<2x32xf32>
    %144 = vector.extract_strided_slice %126 {offsets = [0, 64], sizes = [2, 32], strides = [1, 1]} : vector<2x96xf32> to vector<2x32xf32>
    %145 = vector.broadcast %1 : vector<1x32xf32> to vector<2x32xf32>
    %146 = arith.addf %144, %145 : vector<2x32xf32>
    %147 = arith.mulf %134, %146 : vector<2x32xf32>
    %148 = arith.addf %143, %147 : vector<2x32xf32>
    %149 = math.tanh %148 : vector<2x32xf32>
    %150 = arith.subf %122, %149 : vector<2x32xf32>
    %151 = arith.mulf %142, %150 : vector<2x32xf32>
    %152 = arith.addf %149, %151 : vector<2x32xf32>
    %c5_i32 = arith.constant 5 : i32
    %153 = arith.index_cast %c5_i32 : i32 to index
    %c0_28 = arith.constant 0 : index
    %c0_29 = arith.constant 0 : index
    %154 = vector.load %arg0[%153, %c0_28, %c0_29] : memref<8x2x96xf32, #tpu.memory_space<vmem>>, vector<1x2x96xf32>
    %155 = vector.shape_cast %154 : vector<1x2x96xf32> to vector<2x96xf32>
    %cst_30 = arith.constant dense<0.000000e+00> : vector<2x96xf32>
    %156 = tpu.matmul %152, %0, %cst_30 {dimension_numbers = #tpu.dot_dimension_numbers<[1], [0], [0], [1], [0, 0, 1, 1], [], []>} : vector<2x32xf32>, vector<32x96xf32>, vector<2x96xf32> -> vector<2x96xf32>
    %157 = vector.extract_strided_slice %155 {offsets = [0, 0], sizes = [2, 32], strides = [1, 1]} : vector<2x96xf32> to vector<2x32xf32>
    %158 = vector.extract_strided_slice %156 {offsets = [0, 0], sizes = [2, 32], strides = [1, 1]} : vector<2x96xf32> to vector<2x32xf32>
    %159 = arith.addf %157, %158 : vector<2x32xf32>
    %160 = arith.negf %159 : vector<2x32xf32>
    %161 = math.exp %160 : vector<2x32xf32>
    %cst_31 = arith.constant 1.000000e+00 : f32
    %162 = vector.broadcast %cst_31 : f32 to vector<2x32xf32>
    %163 = arith.addf %162, %161 : vector<2x32xf32>
    %164 = arith.divf %162, %163 : vector<2x32xf32>
    %165 = vector.extract_strided_slice %155 {offsets = [0, 32], sizes = [2, 32], strides = [1, 1]} : vector<2x96xf32> to vector<2x32xf32>
    %166 = vector.extract_strided_slice %156 {offsets = [0, 32], sizes = [2, 32], strides = [1, 1]} : vector<2x96xf32> to vector<2x32xf32>
    %167 = arith.addf %165, %166 : vector<2x32xf32>
    %168 = arith.negf %167 : vector<2x32xf32>
    %169 = math.exp %168 : vector<2x32xf32>
    %cst_32 = arith.constant 1.000000e+00 : f32
    %170 = vector.broadcast %cst_32 : f32 to vector<2x32xf32>
    %171 = arith.addf %170, %169 : vector<2x32xf32>
    %172 = arith.divf %170, %171 : vector<2x32xf32>
    %173 = vector.extract_strided_slice %155 {offsets = [0, 64], sizes = [2, 32], strides = [1, 1]} : vector<2x96xf32> to vector<2x32xf32>
    %174 = vector.extract_strided_slice %156 {offsets = [0, 64], sizes = [2, 32], strides = [1, 1]} : vector<2x96xf32> to vector<2x32xf32>
    %175 = vector.broadcast %1 : vector<1x32xf32> to vector<2x32xf32>
    %176 = arith.addf %174, %175 : vector<2x32xf32>
    %177 = arith.mulf %164, %176 : vector<2x32xf32>
    %178 = arith.addf %173, %177 : vector<2x32xf32>
    %179 = math.tanh %178 : vector<2x32xf32>
    %180 = arith.subf %152, %179 : vector<2x32xf32>
    %181 = arith.mulf %172, %180 : vector<2x32xf32>
    %182 = arith.addf %179, %181 : vector<2x32xf32>
    %c6_i32 = arith.constant 6 : i32
    %183 = arith.index_cast %c6_i32 : i32 to index
    %c0_33 = arith.constant 0 : index
    %c0_34 = arith.constant 0 : index
    %184 = vector.load %arg0[%183, %c0_33, %c0_34] : memref<8x2x96xf32, #tpu.memory_space<vmem>>, vector<1x2x96xf32>
    %185 = vector.shape_cast %184 : vector<1x2x96xf32> to vector<2x96xf32>
    %cst_35 = arith.constant dense<0.000000e+00> : vector<2x96xf32>
    %186 = tpu.matmul %182, %0, %cst_35 {dimension_numbers = #tpu.dot_dimension_numbers<[1], [0], [0], [1], [0, 0, 1, 1], [], []>} : vector<2x32xf32>, vector<32x96xf32>, vector<2x96xf32> -> vector<2x96xf32>
    %187 = vector.extract_strided_slice %185 {offsets = [0, 0], sizes = [2, 32], strides = [1, 1]} : vector<2x96xf32> to vector<2x32xf32>
    %188 = vector.extract_strided_slice %186 {offsets = [0, 0], sizes = [2, 32], strides = [1, 1]} : vector<2x96xf32> to vector<2x32xf32>
    %189 = arith.addf %187, %188 : vector<2x32xf32>
    %190 = arith.negf %189 : vector<2x32xf32>
    %191 = math.exp %190 : vector<2x32xf32>
    %cst_36 = arith.constant 1.000000e+00 : f32
    %192 = vector.broadcast %cst_36 : f32 to vector<2x32xf32>
    %193 = arith.addf %192, %191 : vector<2x32xf32>
    %194 = arith.divf %192, %193 : vector<2x32xf32>
    %195 = vector.extract_strided_slice %185 {offsets = [0, 32], sizes = [2, 32], strides = [1, 1]} : vector<2x96xf32> to vector<2x32xf32>
    %196 = vector.extract_strided_slice %186 {offsets = [0, 32], sizes = [2, 32], strides = [1, 1]} : vector<2x96xf32> to vector<2x32xf32>
    %197 = arith.addf %195, %196 : vector<2x32xf32>
    %198 = arith.negf %197 : vector<2x32xf32>
    %199 = math.exp %198 : vector<2x32xf32>
    %cst_37 = arith.constant 1.000000e+00 : f32
    %200 = vector.broadcast %cst_37 : f32 to vector<2x32xf32>
    %201 = arith.addf %200, %199 : vector<2x32xf32>
    %202 = arith.divf %200, %201 : vector<2x32xf32>
    %203 = vector.extract_strided_slice %185 {offsets = [0, 64], sizes = [2, 32], strides = [1, 1]} : vector<2x96xf32> to vector<2x32xf32>
    %204 = vector.extract_strided_slice %186 {offsets = [0, 64], sizes = [2, 32], strides = [1, 1]} : vector<2x96xf32> to vector<2x32xf32>
    %205 = vector.broadcast %1 : vector<1x32xf32> to vector<2x32xf32>
    %206 = arith.addf %204, %205 : vector<2x32xf32>
    %207 = arith.mulf %194, %206 : vector<2x32xf32>
    %208 = arith.addf %203, %207 : vector<2x32xf32>
    %209 = math.tanh %208 : vector<2x32xf32>
    %210 = arith.subf %182, %209 : vector<2x32xf32>
    %211 = arith.mulf %202, %210 : vector<2x32xf32>
    %212 = arith.addf %209, %211 : vector<2x32xf32>
    %c7_i32 = arith.constant 7 : i32
    %213 = arith.index_cast %c7_i32 : i32 to index
    %c0_38 = arith.constant 0 : index
    %c0_39 = arith.constant 0 : index
    %214 = vector.load %arg0[%213, %c0_38, %c0_39] : memref<8x2x96xf32, #tpu.memory_space<vmem>>, vector<1x2x96xf32>
    %215 = vector.shape_cast %214 : vector<1x2x96xf32> to vector<2x96xf32>
    %cst_40 = arith.constant dense<0.000000e+00> : vector<2x96xf32>
    %216 = tpu.matmul %212, %0, %cst_40 {dimension_numbers = #tpu.dot_dimension_numbers<[1], [0], [0], [1], [0, 0, 1, 1], [], []>} : vector<2x32xf32>, vector<32x96xf32>, vector<2x96xf32> -> vector<2x96xf32>
    %217 = vector.extract_strided_slice %215 {offsets = [0, 0], sizes = [2, 32], strides = [1, 1]} : vector<2x96xf32> to vector<2x32xf32>
    %218 = vector.extract_strided_slice %216 {offsets = [0, 0], sizes = [2, 32], strides = [1, 1]} : vector<2x96xf32> to vector<2x32xf32>
    %219 = arith.addf %217, %218 : vector<2x32xf32>
    %220 = arith.negf %219 : vector<2x32xf32>
    %221 = math.exp %220 : vector<2x32xf32>
    %cst_41 = arith.constant 1.000000e+00 : f32
    %222 = vector.broadcast %cst_41 : f32 to vector<2x32xf32>
    %223 = arith.addf %222, %221 : vector<2x32xf32>
    %224 = arith.divf %222, %223 : vector<2x32xf32>
    %225 = vector.extract_strided_slice %215 {offsets = [0, 32], sizes = [2, 32], strides = [1, 1]} : vector<2x96xf32> to vector<2x32xf32>
    %226 = vector.extract_strided_slice %216 {offsets = [0, 32], sizes = [2, 32], strides = [1, 1]} : vector<2x96xf32> to vector<2x32xf32>
    %227 = arith.addf %225, %226 : vector<2x32xf32>
    %228 = arith.negf %227 : vector<2x32xf32>
    %229 = math.exp %228 : vector<2x32xf32>
    %cst_42 = arith.constant 1.000000e+00 : f32
    %230 = vector.broadcast %cst_42 : f32 to vector<2x32xf32>
    %231 = arith.addf %230, %229 : vector<2x32xf32>
    %232 = arith.divf %230, %231 : vector<2x32xf32>
    %233 = vector.extract_strided_slice %215 {offsets = [0, 64], sizes = [2, 32], strides = [1, 1]} : vector<2x96xf32> to vector<2x32xf32>
    %234 = vector.extract_strided_slice %216 {offsets = [0, 64], sizes = [2, 32], strides = [1, 1]} : vector<2x96xf32> to vector<2x32xf32>
    %235 = vector.broadcast %1 : vector<1x32xf32> to vector<2x32xf32>
    %236 = arith.addf %234, %235 : vector<2x32xf32>
    %237 = arith.mulf %224, %236 : vector<2x32xf32>
    %238 = arith.addf %233, %237 : vector<2x32xf32>
    %239 = math.tanh %238 : vector<2x32xf32>
    %240 = arith.subf %212, %239 : vector<2x32xf32>
    %241 = arith.mulf %232, %240 : vector<2x32xf32>
    %242 = arith.addf %239, %241 : vector<2x32xf32>
    %c8_i32 = arith.constant 8 : i32
    %c0_43 = arith.constant 0 : index
    %c0_44 = arith.constant 0 : index
    %243 = vector.load %arg3[%c0_43, %c0_44] : memref<32x4xf32, #tpu.memory_space<vmem>>, vector<32x4xf32>
    %cst_45 = arith.constant dense<0.000000e+00> : vector<2x4xf32>
    %244 = tpu.matmul %242, %243, %cst_45 {dimension_numbers = #tpu.dot_dimension_numbers<[1], [0], [0], [1], [0, 0, 1, 1], [], []>} : vector<2x32xf32>, vector<32x4xf32>, vector<2x4xf32> -> vector<2x4xf32>
    %c0_46 = arith.constant 0 : index
    %c0_47 = arith.constant 0 : index
    %245 = vector.load %arg4[%c0_46, %c0_47] : memref<1x4xf32, #tpu.memory_space<vmem>>, vector<1x4xf32>
    %246 = vector.broadcast %245 : vector<1x4xf32> to vector<2x4xf32>
    %247 = arith.addf %244, %246 : vector<2x4xf32>
    %c0_48 = arith.constant 0 : index
    %c0_49 = arith.constant 0 : index
    %248 = vector.load %arg5[%c0_48, %c0_49] : memref<2x4xf32, #tpu.memory_space<vmem>>, vector<2x4xf32>
    tpu.vector_store %arg5[%c0_48, %c0_49], %247 {strides = array<i32>} : memref<2x4xf32, #tpu.memory_space<vmem>>, vector<2x4xf32>,
    return
  }
}

</mosaic_0001>

<llo_original>
// kernel: gru_model_forward.1
$region0: #{gru_model_forward.1}
  #allocation0 [shape = 'u32[]', space=smem, size = 0x4, offset = 0x4, fixed_abs, tag = 'smem constant byte address 0x4 - core index']
  #allocation1 [shape = 'u32[144,128]{1,0:T(1,128)}', space=vmem, size = 0x12000, scoped, tag = 'internal scratch']
  %s0 = inlined_call_operand.vmem [shape: f32[8,2,96], index: 0, kind: input, shape index: {}]
  %s1 = inlined_call_operand.vmem [shape: f32[32,96], index: 1, kind: input, shape index: {}]
  %s2 = inlined_call_operand.vmem [shape: f32[1,32], index: 2, kind: input, shape index: {}]
  %s3 = inlined_call_operand.vmem [shape: f32[32,4], index: 3, kind: input, shape index: {}]
  %s4 = inlined_call_operand.vmem [shape: f32[1,4], index: 4, kind: input, shape index: {}]
  %s5 = inlined_call_operand.hbm [shape: f32[2,4], index: 5, kind: output, shape index: {}]
  %s6 = sld [smem:[#allocation0]]
  $region30: #{gru_model_forward.1} parent=0
    _
  %s8 = ssub.s32 1, %s6
  %s9 = scalar_select 0, %s8, %s6
  $region1: #{gru_model_forward.1} parent=0
    #allocation2 [shape = 'u8[1024]{0}', space=vmem, size = 0x400, scoped, tag = 'output window, operand 0, single buffered']
    #allocation3 [shape = 's32[1]{0}', space=sflag, size = 0x4, scoped, tag = 'scoped memory for gru_model_forward.1']
    %10 = vsyncpa [#allocation3], 0
    // Predicated region
    $region2: #{gru_model_forward.1} parent=1 // pred_check
      _
    $region3: #{gru_model_forward.1} parent=1 // pred_check_branch
      %12 = sbr.rel (0) target = $region5
    $region4: #{gru_model_forward.1} parent=1 // pred_region
      _
    $region5: #{gru_model_forward.1} parent=1 // pred_fallthru
      _
    // Predicated region
    $region6: #{gru_model_forward.1} parent=1 // pred_check
      _
    $region7: #{gru_model_forward.1} parent=1 // pred_check_branch
      %14 = sbr.rel (0) target = $region9
    $region8: #{gru_model_forward.1} parent=1 // pred_region
      _
    $region9: #{gru_model_forward.1} parent=1 // pred_fallthru
      _
    // Predicated region
    $region10: #{gru_model_forward.1} parent=1 // pred_check
      _
    $region11: #{gru_model_forward.1} parent=1 // pred_check_branch
      %16 = sbr.rel (0) target = $region13
    $region12: #{gru_model_forward.1} parent=1 // pred_region
      _
    $region13: #{gru_model_forward.1} parent=1 // pred_fallthru
      _
    // Predicated region
    $region14: #{gru_model_forward.1} parent=1 // pred_check
      _
    $region15: #{gru_model_forward.1} parent=1 // pred_check_branch
      %18 = sbr.rel (0) target = $region17
    $region16: #{gru_model_forward.1} parent=1 // pred_region
      _
    $region17: #{gru_model_forward.1} parent=1 // pred_fallthru
      _
    // Predicated region
    $region18: #{gru_model_forward.1} parent=1 // pred_check
      _
    $region19: #{gru_model_forward.1} parent=1 // pred_check_branch
      %20 = sbr.rel (0) target = $region21
    $region20: #{gru_model_forward.1} parent=1 // pred_region
      _
    $region21: #{gru_model_forward.1} parent=1 // pred_fallthru
      _
    %v21 = vld [vmem:[%s1] sm:$0xff]
    %v22 = vld [vmem:[%s1 + $0x8] sm:$0xff]
    %v23 = vld [vmem:[%s1 + $0x10] sm:$0xff]
    %v24 = vld [vmem:[%s1 + $0x18] sm:$0xff]
    %v25 = vld [vmem:[%s2] sm:$0x1]
    %v26 = vld [vmem:[%s0] sm:$0x3]
    %vm27 = vcmask 261120
    %v29 = vsel %vm27, 0.0, 0
    %31 = vmatprep.subr.mxu0 0.0
    %32 = vmatpush1.msra.mxu0 0.0
    %33 = vmatprep.subr.mxu0 0.0
    %34 = vmatpush1.msra.mxu0 0.0
    %35 = vmatprep.subr.mxu0 0.0
    %36 = vmatpush1.msra.mxu0 0.0
    %37 = vmatprep.subr.mxu0 0.0
    %38 = vmatpush1.msra.mxu0 0.0
    %39 = vmatprep.subr.mxu0 0.0
    %40 = vmatpush1.msra.mxu0 0.0
    %41 = vmatprep.subr.mxu0 0.0
    %42 = vmatpush1.msra.mxu0 0.0
    %43 = vmatprep.subr.mxu0 0.0
    %44 = vmatpush1.msra.mxu0 0.0
    %45 = vmatprep.subr.mxu0 0.0
    %46 = vmatpush1.msra.mxu0 0.0
    %47 = vmatprep.subr.mxu0 0.0
    %48 = vmatpush1.msra.mxu0 0.0
    %49 = vmatprep.subr.mxu0 0.0
    %50 = vmatpush1.msra.mxu0 0.0
    %51 = vmatprep.subr.mxu0 0.0
    %52 = vmatpush1.msra.mxu0 0.0
    %53 = vmatprep.subr.mxu0 0.0
    %54 = vmatpush1.msra.mxu0 0.0
    %55 = vmatprep.subr.mxu0 0.0
    %56 = vmatpush1.msra.mxu0 %v24
    %57 = vmatprep.subr.mxu0 0.0
    %58 = vmatpush1.msra.mxu0 %v23
    %59 = vmatprep.subr.mxu0 0.0
    %60 = vmatpush1.msra.mxu0 %v22
    %61 = vmatprep.subr.mxu0 0.0
    %62 = vmatpush1.msra.mxu0 %v21
    %63 = vmatprep.subr.mxu0 0.0
    %64 = vmatpush2.msra.mxu0 0.0
    %65 = vmatprep.subr.mxu0 0.0
    %66 = vmatpush2.msra.mxu0 0.0
    %67 = vmatprep.subr.mxu0 0.0
    %68 = vmatpush2.msra.mxu0 0.0
    %69 = vmatprep.subr.mxu0 0.0
    %70 = vmatpush2.msra.mxu0 0.0
    %71 = vmatprep.subr.mxu0 0.0
    %72 = vmatpush2.msra.mxu0 0.0
    %73 = vmatprep.subr.mxu0 0.0
    %74 = vmatpush2.msra.mxu0 0.0
    %75 = vmatprep.subr.mxu0 0.0
    %76 = vmatpush2.msra.mxu0 0.0
    %77 = vmatprep.subr.mxu0 0.0
    %78 = vmatpush2.msra.mxu0 0.0
    %79 = vmatprep.subr.mxu0 0.0
    %80 = vmatpush2.msra.mxu0 0.0
    %81 = vmatprep.subr.mxu0 0.0
    %82 = vmatpush2.msra.mxu0 0.0
    %83 = vmatprep.subr.mxu0 0.0
    %84 = vmatpush2.msra.mxu0 0.0
    %85 = vmatprep.subr.mxu0 0.0
    %86 = vmatpush2.msra.mxu0 0.0
    %87 = vmatprep.subr.mxu0 0.0
    %88 = vmatpush2.msra.mxu0 0.0
    %89 = vmatprep.subr.mxu0 0.0
    %90 = vmatpush2.msra.mxu0 0.0
    %91 = vmatprep.subr.mxu0 0.0
    %92 = vmatpush2.msra.mxu0 0.0
    %93 = vmatprep.subr.mxu0 0.0
    %94 = vmatpush2.msra.mxu0 0.0
    %95 = vmatprep.mubr.f32.mxu0 0.0
    %96 = vmatmul.mubr.f32.gmra.mxu0 %v29
    %v97 = vpop.f32.mrf.mxu0
    %v98 = vadd.f32 0.0, %v97
    %v99 = vpop.f32.mrf.mxu0
    %100 = vdwg.mxu0
    %v101 = vadd.f32 %v26, %v98
    %v102 = vxor.u32 %v101, 2147483648
    %v103 = vmul.f32 %v102, 1.442695
    %v104 = vpow.pop %v103
    %v105 = vadd.f32 %v104, 1.0
    %v106 = vrcp.pop %v105
    %v107 = vmul.f32 1.0, %v106
    %v109 = vlaneseq
    %v110 = vshrl.u32 %v109, 7
    %v111 = vsub.s32 0, %v110
    %v112 = vrot.slane %v25, %v111
    %113 = vrot.lane.b32.xlu0 %v112, 64
    %v114 = vpop.permute.xlu0 %113
    %v116 = vadd.f32 %v98, %v114
    %118 = vrot.lane.b32.xlu0 %v116, 64
    %v119 = vpop.permute.xlu0 %118
    %v121 = vmul.f32 %v107, %v119
    %123 = vrot.lane.b32.xlu0 %v121, 64
    %v124 = vpop.permute.xlu0 %123
    %v126 = vadd.f32 %v26, %v124
    %v127 = vtanh.pop %v126
    %v128 = vsub.f32 0.0, %v127
    %130 = vrot.lane.b32.xlu0 %v128, 96
    %v131 = vpop.permute.xlu0 %130
    %v133 = vmul.f32 %v107, %v131
    %135 = vrot.lane.b32.xlu0 %v133, 32
    %v136 = vpop.permute.xlu0 %135
    %v138 = vadd.f32 %v127, %v136
    %s139 = scalar_lea.vmem %s0, 2
    %v140 = vld [vmem:[%s139] sm:$0x3]
    %142 = vrot.lane.b32.xlu0 %v138, 64
    %v143 = vpop.permute.xlu0 %142
    %v144 = vsel %vm27, %v143, 0
    %146 = vmatprep.subr.mxu0 0.0
    %147 = vmatpush1.msra.mxu0 0.0
    %148 = vmatprep.subr.mxu0 0.0
    %149 = vmatpush1.msra.mxu0 0.0
    %150 = vmatprep.subr.mxu0 0.0
    %151 = vmatpush1.msra.mxu0 0.0
    %152 = vmatprep.subr.mxu0 0.0
    %153 = vmatpush1.msra.mxu0 0.0
    %154 = vmatprep.subr.mxu0 0.0
    %155 = vmatpush1.msra.mxu0 0.0
    %156 = vmatprep.subr.mxu0 0.0
    %157 = vmatpush1.msra.mxu0 0.0
    %158 = vmatprep.subr.mxu0 0.0
    %159 = vmatpush1.msra.mxu0 0.0
    %160 = vmatprep.subr.mxu0 0.0
    %161 = vmatpush1.msra.mxu0 0.0
    %162 = vmatprep.subr.mxu0 0.0
    %163 = vmatpush1.msra.mxu0 0.0
    %164 = vmatprep.subr.mxu0 0.0
    %165 = vmatpush1.msra.mxu0 0.0
    %166 = vmatprep.subr.mxu0 0.0
    %167 = vmatpush1.msra.mxu0 0.0
    %168 = vmatprep.subr.mxu0 0.0
    %169 = vmatpush1.msra.mxu0 0.0
    %170 = vmatprep.subr.mxu0 0.0
    %171 = vmatpush1.msra.mxu0 %v24
    %172 = vmatprep.subr.mxu0 0.0
    %173 = vmatpush1.msra.mxu0 %v23
    %174 = vmatprep.subr.mxu0 0.0
    %175 = vmatpush1.msra.mxu0 %v22
    %176 = vmatprep.subr.mxu0 0.0
    %177 = vmatpush1.msra.mxu0 %v21
    %178 = vmatprep.subr.mxu0 0.0
    %179 = vmatpush2.msra.mxu0 0.0
    %180 = vmatprep.subr.mxu0 0.0
    %181 = vmatpush2.msra.mxu0 0.0
    %182 = vmatprep.subr.mxu0 0.0
    %183 = vmatpush2.msra.mxu0 0.0
    %184 = vmatprep.subr.mxu0 0.0
    %185 = vmatpush2.msra.mxu0 0.0
    %186 = vmatprep.subr.mxu0 0.0
    %187 = vmatpush2.msra.mxu0 0.0
    %188 = vmatprep.subr.mxu0 0.0
    %189 = vmatpush2.msra.mxu0 0.0
    %190 = vmatprep.subr.mxu0 0.0
    %191 = vmatpush2.msra.mxu0 0.0
    %192 = vmatprep.subr.mxu0 0.0
    %193 = vmatpush2.msra.mxu0 0.0
    %194 = vmatprep.subr.mxu0 0.0
    %195 = vmatpush2.msra.mxu0 0.0
    %196 = vmatprep.subr.mxu0 0.0
    %197 = vmatpush2.msra.mxu0 0.0
    %198 = vmatprep.subr.mxu0 0.0
    %199 = vmatpush2.msra.mxu0 0.0
    %200 = vmatprep.subr.mxu0 0.0
    %201 = vmatpush2.msra.mxu0 0.0
    %202 = vmatprep.subr.mxu0 0.0
    %203 = vmatpush2.msra.mxu0 0.0
    %204 = vmatprep.subr.mxu0 0.0
    %205 = vmatpush2.msra.mxu0 0.0
    %206 = vmatprep.subr.mxu0 0.0
    %207 = vmatpush2.msra.mxu0 0.0
    %208 = vmatprep.subr.mxu0 0.0
    %209 = vmatpush2.msra.mxu0 0.0
    %210 = vmatprep.mubr.f32.mxu0 0.0
    %211 = vmatmul.mubr.f32.gmra.mxu0 %v144
    %v212 = vpop.f32.mrf.mxu0
    %v213 = vadd.f32 0.0, %v212
    %v214 = vpop.f32.mrf.mxu0
    %215 = vdwg.mxu0
    %v216 = vadd.f32 %v140, %v213
    %v217 = vxor.u32 %v216, 2147483648
    %v218 = vmul.f32 %v217, 1.442695
    %v219 = vpow.pop %v218
    %v220 = vadd.f32 %v219, 1.0
    %v221 = vrcp.pop %v220
    %v222 = vmul.f32 1.0, %v221
    %v223 = vadd.f32 %v213, %v114
    %225 = vrot.lane.b32.xlu0 %v223, 64
    %v226 = vpop.permute.xlu0 %225
    %v228 = vmul.f32 %v222, %v226
    %230 = vrot.lane.b32.xlu0 %v228, 64
    %v231 = vpop.permute.xlu0 %230
    %v233 = vadd.f32 %v140, %v231
    %v234 = vtanh.pop %v233
    %v235 = vsub.f32 %v138, %v234
    %237 = vrot.lane.b32.xlu0 %v235, 96
    %v238 = vpop.permute.xlu0 %237
    %v240 = vmul.f32 %v222, %v238
    %242 = vrot.lane.b32.xlu0 %v240, 32
    %v243 = vpop.permute.xlu0 %242
    %v245 = vadd.f32 %v234, %v243
    %s246 = scalar_lea.vmem %s0, 4
    %v247 = vld [vmem:[%s246] sm:$0x3]
    %249 = vrot.lane.b32.xlu0 %v245, 64
    %v250 = vpop.permute.xlu0 %249
    %v251 = vsel %vm27, %v250, 0
    %253 = vmatprep.subr.mxu0 0.0
    %254 = vmatpush1.msra.mxu0 0.0
    %255 = vmatprep.subr.mxu0 0.0
    %256 = vmatpush1.msra.mxu0 0.0
    %257 = vmatprep.subr.mxu0 0.0
    %258 = vmatpush1.msra.mxu0 0.0
    %259 = vmatprep.subr.mxu0 0.0
    %260 = vmatpush1.msra.mxu0 0.0
    %261 = vmatprep.subr.mxu0 0.0
    %262 = vmatpush1.msra.mxu0 0.0
    %263 = vmatprep.subr.mxu0 0.0
    %264 = vmatpush1.msra.mxu0 0.0
    %265 = vmatprep.subr.mxu0 0.0
    %266 = vmatpush1.msra.mxu0 0.0
    %267 = vmatprep.subr.mxu0 0.0
    %268 = vmatpush1.msra.mxu0 0.0
    %269 = vmatprep.subr.mxu0 0.0
    %270 = vmatpush1.msra.mxu0 0.0
    %271 = vmatprep.subr.mxu0 0.0
    %272 = vmatpush1.msra.mxu0 0.0
    %273 = vmatprep.subr.mxu0 0.0
    %274 = vmatpush1.msra.mxu0 0.0
    %275 = vmatprep.subr.mxu0 0.0
    %276 = vmatpush1.msra.mxu0 0.0
    %277 = vmatprep.subr.mxu0 0.0
    %278 = vmatpush1.msra.mxu0 %v24
    %279 = vmatprep.subr.mxu0 0.0
    %280 = vmatpush1.msra.mxu0 %v23
    %281 = vmatprep.subr.mxu0 0.0
    %282 = vmatpush1.msra.mxu0 %v22
    %283 = vmatprep.subr.mxu0 0.0
    %284 = vmatpush1.msra.mxu0 %v21
    %285 = vmatprep.subr.mxu0 0.0
    %286 = vmatpush2.msra.mxu0 0.0
    %287 = vmatprep.subr.mxu0 0.0
    %288 = vmatpush2.msra.mxu0 0.0
    %289 = vmatprep.subr.mxu0 0.0
    %290 = vmatpush2.msra.mxu0 0.0
    %291 = vmatprep.subr.mxu0 0.0
    %292 = vmatpush2.msra.mxu0 0.0
    %293 = vmatprep.subr.mxu0 0.0
    %294 = vmatpush2.msra.mxu0 0.0
    %295 = vmatprep.subr.mxu0 0.0
    %296 = vmatpush2.msra.mxu0 0.0
    %297 = vmatprep.subr.mxu0 0.0
    %298 = vmatpush2.msra.mxu0 0.0
    %299 = vmatprep.subr.mxu0 0.0
    %300 = vmatpush2.msra.mxu0 0.0
    %301 = vmatprep.subr.mxu0 0.0
    %302 = vmatpush2.msra.mxu0 0.0
    %303 = vmatprep.subr.mxu0 0.0
    %304 = vmatpush2.msra.mxu0 0.0
    %305 = vmatprep.subr.mxu0 0.0
    %306 = vmatpush2.msra.mxu0 0.0
    %307 = vmatprep.subr.mxu0 0.0
    %308 = vmatpush2.msra.mxu0 0.0
    %309 = vmatprep.subr.mxu0 0.0
    %310 = vmatpush2.msra.mxu0 0.0
    %311 = vmatprep.subr.mxu0 0.0
    %312 = vmatpush2.msra.mxu0 0.0
    %313 = vmatprep.subr.mxu0 0.0
    %314 = vmatpush2.msra.mxu0 0.0
    %315 = vmatprep.subr.mxu0 0.0
    %316 = vmatpush2.msra.mxu0 0.0
    %317 = vmatprep.mubr.f32.mxu0 0.0
    %318 = vmatmul.mubr.f32.gmra.mxu0 %v251
    %v319 = vpop.f32.mrf.mxu0
    %v320 = vadd.f32 0.0, %v319
    %v321 = vpop.f32.mrf.mxu0
    %322 = vdwg.mxu0
    %v323 = vadd.f32 %v247, %v320
    %v324 = vxor.u32 %v323, 2147483648
    %v325 = vmul.f32 %v324, 1.442695
    %v326 = vpow.pop %v325
    %v327 = vadd.f32 %v326, 1.0
    %v328 = vrcp.pop %v327
    %v329 = vmul.f32 1.0, %v328
    %v330 = vadd.f32 %v320, %v114
    %332 = vrot.lane.b32.xlu0 %v330, 64
    %v333 = vpop.permute.xlu0 %332
    %v335 = vmul.f32 %v329, %v333
    %337 = vrot.lane.b32.xlu0 %v335, 64
    %v338 = vpop.permute.xlu0 %337
    %v340 = vadd.f32 %v247, %v338
    %v341 = vtanh.pop %v340
    %v342 = vsub.f32 %v245, %v341
    %344 = vrot.lane.b32.xlu0 %v342, 96
    %v345 = vpop.permute.xlu0 %344
    %v347 = vmul.f32 %v329, %v345
    %349 = vrot.lane.b32.xlu0 %v347, 32
    %v350 = vpop.permute.xlu0 %349
    %v352 = vadd.f32 %v341, %v350
    %s353 = scalar_lea.vmem %s0, 6
    %v354 = vld [vmem:[%s353] sm:$0x3]
    %356 = vrot.lane.b32.xlu0 %v352, 64
    %v357 = vpop.permute.xlu0 %356
    %v358 = vsel %vm27, %v357, 0
    %360 = vmatprep.subr.mxu0 0.0
    %361 = vmatpush1.msra.mxu0 0.0
    %362 = vmatprep.subr.mxu0 0.0
    %363 = vmatpush1.msra.mxu0 0.0
    %364 = vmatprep.subr.mxu0 0.0
    %365 = vmatpush1.msra.mxu0 0.0
    %366 = vmatprep.subr.mxu0 0.0
    %367 = vmatpush1.msra.mxu0 0.0
    %368 = vmatprep.subr.mxu0 0.0
    %369 = vmatpush1.msra.mxu0 0.0
    %370 = vmatprep.subr.mxu0 0.0
    %371 = vmatpush1.msra.mxu0 0.0
    %372 = vmatprep.subr.mxu0 0.0
    %373 = vmatpush1.msra.mxu0 0.0
    %374 = vmatprep.subr.mxu0 0.0
    %375 = vmatpush1.msra.mxu0 0.0
    %376 = vmatprep.subr.mxu0 0.0
    %377 = vmatpush1.msra.mxu0 0.0
    %378 = vmatprep.subr.mxu0 0.0
    %379 = vmatpush1.msra.mxu0 0.0
    %380 = vmatprep.subr.mxu0 0.0
    %381 = vmatpush1.msra.mxu0 0.0
    %382 = vmatprep.subr.mxu0 0.0
    %383 = vmatpush1.msra.mxu0 0.0
    %384 = vmatprep.subr.mxu0 0.0
    %385 = vmatpush1.msra.mxu0 %v24
    %386 = vmatprep.subr.mxu0 0.0
    %387 = vmatpush1.msra.mxu0 %v23
    %388 = vmatprep.subr.mxu0 0.0
    %389 = vmatpush1.msra.mxu0 %v22
    %390 = vmatprep.subr.mxu0 0.0
    %391 = vmatpush1.msra.mxu0 %v21
    %392 = vmatprep.subr.mxu0 0.0
    %393 = vmatpush2.msra.mxu0 0.0
    %394 = vmatprep.subr.mxu0 0.0
    %395 = vmatpush2.msra.mxu0 0.0
    %396 = vmatprep.subr.mxu0 0.0
    %397 = vmatpush2.msra.mxu0 0.0
    %398 = vmatprep.subr.mxu0 0.0
    %399 = vmatpush2.msra.mxu0 0.0
    %400 = vmatprep.subr.mxu0 0.0
    %401 = vmatpush2.msra.mxu0 0.0
    %402 = vmatprep.subr.mxu0 0.0
    %403 = vmatpush2.msra.mxu0 0.0
    %404 = vmatprep.subr.mxu0 0.0
    %405 = vmatpush2.msra.mxu0 0.0
    %406 = vmatprep.subr.mxu0 0.0
    %407 = vmatpush2.msra.mxu0 0.0
    %408 = vmatprep.subr.mxu0 0.0
    %409 = vmatpush2.msra.mxu0 0.0
    %410 = vmatprep.subr.mxu0 0.0
    %411 = vmatpush2.msra.mxu0 0.0
    %412 = vmatprep.subr.mxu0 0.0
    %413 = vmatpush2.msra.mxu0 0.0
    %414 = vmatprep.subr.mxu0 0.0
    %415 = vmatpush2.msra.mxu0 0.0
    %416 = vmatprep.subr.mxu0 0.0
    %417 = vmatpush2.msra.mxu0 0.0
    %418 = vmatprep.subr.mxu0 0.0
    %419 = vmatpush2.msra.mxu0 0.0
    %420 = vmatprep.subr.mxu0 0.0
    %421 = vmatpush2.msra.mxu0 0.0
    %422 = vmatprep.subr.mxu0 0.0
    %423 = vmatpush2.msra.mxu0 0.0
    %424 = vmatprep.mubr.f32.mxu0 0.0
    %425 = vmatmul.mubr.f32.gmra.mxu0 %v358
    %v426 = vpop.f32.mrf.mxu0
    %v427 = vadd.f32 0.0, %v426
    %v428 = vpop.f32.mrf.mxu0
    %429 = vdwg.mxu0
    %v430 = vadd.f32 %v354, %v427
    %v431 = vxor.u32 %v430, 2147483648
    %v432 = vmul.f32 %v431, 1.442695
    %v433 = vpow.pop %v432
    %v434 = vadd.f32 %v433, 1.0
    %v435 = vrcp.pop %v434
    %v436 = vmul.f32 1.0, %v435
    %v437 = vadd.f32 %v427, %v114
    %439 = vrot.lane.b32.xlu0 %v437, 64
    %v440 = vpop.permute.xlu0 %439
    %v442 = vmul.f32 %v436, %v440
    %444 = vrot.lane.b32.xlu0 %v442, 64
    %v445 = vpop.permute.xlu0 %444
    %v447 = vadd.f32 %v354, %v445
    %v448 = vtanh.pop %v447
    %v449 = vsub.f32 %v352, %v448
    %451 = vrot.lane.b32.xlu0 %v449, 96
    %v452 = vpop.permute.xlu0 %451
    %v454 = vmul.f32 %v436, %v452
    %456 = vrot.lane.b32.xlu0 %v454, 32
    %v457 = vpop.permute.xlu0 %456
    %v459 = vadd.f32 %v448, %v457
    %s460 = scalar_lea.vmem %s0, 8
    %v461 = vld [vmem:[%s460] sm:$0x3]
    %463 = vrot.lane.b32.xlu0 %v459, 64
    %v464 = vpop.permute.xlu0 %463
    %v465 = vsel %vm27, %v464, 0
    %467 = vmatprep.subr.mxu0 0.0
    %468 = vmatpush1.msra.mxu0 0.0
    %469 = vmatprep.subr.mxu0 0.0
    %470 = vmatpush1.msra.mxu0 0.0
    %471 = vmatprep.subr.mxu0 0.0
    %472 = vmatpush1.msra.mxu0 0.0
    %473 = vmatprep.subr.mxu0 0.0
    %474 = vmatpush1.msra.mxu0 0.0
    %475 = vmatprep.subr.mxu0 0.0
    %476 = vmatpush1.msra.mxu0 0.0
    %477 = vmatprep.subr.mxu0 0.0
    %478 = vmatpush1.msra.mxu0 0.0
    %479 = vmatprep.subr.mxu0 0.0
    %480 = vmatpush1.msra.mxu0 0.0
    %481 = vmatprep.subr.mxu0 0.0
    %482 = vmatpush1.msra.mxu0 0.0
    %483 = vmatprep.subr.mxu0 0.0
    %484 = vmatpush1.msra.mxu0 0.0
    %485 = vmatprep.subr.mxu0 0.0
    %486 = vmatpush1.msra.mxu0 0.0
    %487 = vmatprep.subr.mxu0 0.0
    %488 = vmatpush1.msra.mxu0 0.0
    %489 = vmatprep.subr.mxu0 0.0
    %490 = vmatpush1.msra.mxu0 0.0
    %491 = vmatprep.subr.mxu0 0.0
    %492 = vmatpush1.msra.mxu0 %v24
    %493 = vmatprep.subr.mxu0 0.0
    %494 = vmatpush1.msra.mxu0 %v23
    %495 = vmatprep.subr.mxu0 0.0
    %496 = vmatpush1.msra.mxu0 %v22
    %497 = vmatprep.subr.mxu0 0.0
    %498 = vmatpush1.msra.mxu0 %v21
    %499 = vmatprep.subr.mxu0 0.0
    %500 = vmatpush2.msra.mxu0 0.0
    %501 = vmatprep.subr.mxu0 0.0
    %502 = vmatpush2.msra.mxu0 0.0
    %503 = vmatprep.subr.mxu0 0.0
    %504 = vmatpush2.msra.mxu0 0.0
    %505 = vmatprep.subr.mxu0 0.0
    %506 = vmatpush2.msra.mxu0 0.0
    %507 = vmatprep.subr.mxu0 0.0
    %508 = vmatpush2.msra.mxu0 0.0
    %509 = vmatprep.subr.mxu0 0.0
    %510 = vmatpush2.msra.mxu0 0.0
    %511 = vmatprep.subr.mxu0 0.0
    %512 = vmatpush2.msra.mxu0 0.0
    %513 = vmatprep.subr.mxu0 0.0
    %514 = vmatpush2.msra.mxu0 0.0
    %515 = vmatprep.subr.mxu0 0.0
    %516 = vmatpush2.msra.mxu0 0.0
    %517 = vmatprep.subr.mxu0 0.0
    %518 = vmatpush2.msra.mxu0 0.0
    %519 = vmatprep.subr.mxu0 0.0
    %520 = vmatpush2.msra.mxu0 0.0
    %521 = vmatprep.subr.mxu0 0.0
    %522 = vmatpush2.msra.mxu0 0.0
    %523 = vmatprep.subr.mxu0 0.0
    %524 = vmatpush2.msra.mxu0 0.0
    %525 = vmatprep.subr.mxu0 0.0
    %526 = vmatpush2.msra.mxu0 0.0
    %527 = vmatprep.subr.mxu0 0.0
    %528 = vmatpush2.msra.mxu0 0.0
    %529 = vmatprep.subr.mxu0 0.0
    %530 = vmatpush2.msra.mxu0 0.0
    %531 = vmatprep.mubr.f32.mxu0 0.0
    %532 = vmatmul.mubr.f32.gmra.mxu0 %v465
    %v533 = vpop.f32.mrf.mxu0
    %v534 = vadd.f32 0.0, %v533
    %v535 = vpop.f32.mrf.mxu0
    %536 = vdwg.mxu0
    %v537 = vadd.f32 %v461, %v534
    %v538 = vxor.u32 %v537, 2147483648
    %v539 = vmul.f32 %v538, 1.442695
    %v540 = vpow.pop %v539
    %v541 = vadd.f32 %v540, 1.0
    %v542 = vrcp.pop %v541
    %v543 = vmul.f32 1.0, %v542
    %v544 = vadd.f32 %v534, %v114
    %546 = vrot.lane.b32.xlu0 %v544, 64
    %v547 = vpop.permute.xlu0 %546
    %v549 = vmul.f32 %v543, %v547
    %551 = vrot.lane.b32.xlu0 %v549, 64
    %v552 = vpop.permute.xlu0 %551
    %v554 = vadd.f32 %v461, %v552
    %v555 = vtanh.pop %v554
    %v556 = vsub.f32 %v459, %v555
    %558 = vrot.lane.b32.xlu0 %v556, 96
    %v559 = vpop.permute.xlu0 %558
    %v561 = vmul.f32 %v543, %v559
    %563 = vrot.lane.b32.xlu0 %v561, 32
    %v564 = vpop.permute.xlu0 %563
    %v566 = vadd.f32 %v555, %v564
    %s567 = scalar_lea.vmem %s0, 10
    %v568 = vld [vmem:[%s567] sm:$0x3]
    %570 = vrot.lane.b32.xlu0 %v566, 64
    %v571 = vpop.permute.xlu0 %570
    %v572 = vsel %vm27, %v571, 0
    %574 = vmatprep.subr.mxu0 0.0
    %575 = vmatpush1.msra.mxu0 0.0
    %576 = vmatprep.subr.mxu0 0.0
    %577 = vmatpush1.msra.mxu0 0.0
    %578 = vmatprep.subr.mxu0 0.0
    %579 = vmatpush1.msra.mxu0 0.0
    %580 = vmatprep.subr.mxu0 0.0
    %581 = vmatpush1.msra.mxu0 0.0
    %582 = vmatprep.subr.mxu0 0.0
    %583 = vmatpush1.msra.mxu0 0.0
    %584 = vmatprep.subr.mxu0 0.0
    %585 = vmatpush1.msra.mxu0 0.0
    %586 = vmatprep.subr.mxu0 0.0
    %587 = vmatpush1.msra.mxu0 0.0
    %588 = vmatprep.subr.mxu0 0.0
    %589 = vmatpush1.msra.mxu0 0.0
    %590 = vmatprep.subr.mxu0 0.0
    %591 = vmatpush1.msra.mxu0 0.0
    %592 = vmatprep.subr.mxu0 0.0
    %593 = vmatpush1.msra.mxu0 0.0
    %594 = vmatprep.subr.mxu0 0.0
    %595 = vmatpush1.msra.mxu0 0.0
    %596 = vmatprep.subr.mxu0 0.0
    %597 = vmatpush1.msra.mxu0 0.0
    %598 = vmatprep.subr.mxu0 0.0
    %599 = vmatpush1.msra.mxu0 %v24
    %600 = vmatprep.subr.mxu0 0.0
    %601 = vmatpush1.msra.mxu0 %v23
    %602 = vmatprep.subr.mxu0 0.0
    %603 = vmatpush1.msra.mxu0 %v22
    %604 = vmatprep.subr.mxu0 0.0
    %605 = vmatpush1.msra.mxu0 %v21
    %606 = vmatprep.subr.mxu0 0.0
    %607 = vmatpush2.msra.mxu0 0.0
    %608 = vmatprep.subr.mxu0 0.0
    %609 = vmatpush2.msra.mxu0 0.0
    %610 = vmatprep.subr.mxu0 0.0
    %611 = vmatpush2.msra.mxu0 0.0
    %612 = vmatprep.subr.mxu0 0.0
    %613 = vmatpush2.msra.mxu0 0.0
    %614 = vmatprep.subr.mxu0 0.0
    %615 = vmatpush2.msra.mxu0 0.0
    %616 = vmatprep.subr.mxu0 0.0
    %617 = vmatpush2.msra.mxu0 0.0
    %618 = vmatprep.subr.mxu0 0.0
    %619 = vmatpush2.msra.mxu0 0.0
    %620 = vmatprep.subr.mxu0 0.0
    %621 = vmatpush2.msra.mxu0 0.0
    %622 = vmatprep.subr.mxu0 0.0
    %623 = vmatpush2.msra.mxu0 0.0
    %624 = vmatprep.subr.mxu0 0.0
    %625 = vmatpush2.msra.mxu0 0.0
    %626 = vmatprep.subr.mxu0 0.0
    %627 = vmatpush2.msra.mxu0 0.0
    %628 = vmatprep.subr.mxu0 0.0
    %629 = vmatpush2.msra.mxu0 0.0
    %630 = vmatprep.subr.mxu0 0.0
    %631 = vmatpush2.msra.mxu0 0.0
    %632 = vmatprep.subr.mxu0 0.0
    %633 = vmatpush2.msra.mxu0 0.0
    %634 = vmatprep.subr.mxu0 0.0
    %635 = vmatpush2.msra.mxu0 0.0
    %636 = vmatprep.subr.mxu0 0.0
    %637 = vmatpush2.msra.mxu0 0.0
    %638 = vmatprep.mubr.f32.mxu0 0.0
    %639 = vmatmul.mubr.f32.gmra.mxu0 %v572
    %v640 = vpop.f32.mrf.mxu0
    %v641 = vadd.f32 0.0, %v640
    %v642 = vpop.f32.mrf.mxu0
    %643 = vdwg.mxu0
    %v644 = vadd.f32 %v568, %v641
    %v645 = vxor.u32 %v644, 2147483648
    %v646 = vmul.f32 %v645, 1.442695
    %v647 = vpow.pop %v646
    %v648 = vadd.f32 %v647, 1.0
    %v649 = vrcp.pop %v648
    %v650 = vmul.f32 1.0, %v649
    %v651 = vadd.f32 %v641, %v114
    %653 = vrot.lane.b32.xlu0 %v651, 64
    %v654 = vpop.permute.xlu0 %653
    %v656 = vmul.f32 %v650, %v654
    %658 = vrot.lane.b32.xlu0 %v656, 64
    %v659 = vpop.permute.xlu0 %658
    %v661 = vadd.f32 %v568, %v659
    %v662 = vtanh.pop %v661
    %v663 = vsub.f32 %v566, %v662
    %665 = vrot.lane.b32.xlu0 %v663, 96
    %v666 = vpop.permute.xlu0 %665
    %v668 = vmul.f32 %v650, %v666
    %670 = vrot.lane.b32.xlu0 %v668, 32
    %v671 = vpop.permute.xlu0 %670
    %v673 = vadd.f32 %v662, %v671
    %s674 = scalar_lea.vmem %s0, 12
    %v675 = vld [vmem:[%s674] sm:$0x3]
    %677 = vrot.lane.b32.xlu0 %v673, 64
    %v678 = vpop.permute.xlu0 %677
    %v679 = vsel %vm27, %v678, 0
    %681 = vmatprep.subr.mxu0 0.0
    %682 = vmatpush1.msra.mxu0 0.0
    %683 = vmatprep.subr.mxu0 0.0
    %684 = vmatpush1.msra.mxu0 0.0
    %685 = vmatprep.subr.mxu0 0.0
    %686 = vmatpush1.msra.mxu0 0.0
    %687 = vmatprep.subr.mxu0 0.0
    %688 = vmatpush1.msra.mxu0 0.0
    %689 = vmatprep.subr.mxu0 0.0
    %690 = vmatpush1.msra.mxu0 0.0
    %691 = vmatprep.subr.mxu0 0.0
    %692 = vmatpush1.msra.mxu0 0.0
    %693 = vmatprep.subr.mxu0 0.0
    %694 = vmatpush1.msra.mxu0 0.0
    %695 = vmatprep.subr.mxu0 0.0
    %696 = vmatpush1.msra.mxu0 0.0
    %697 = vmatprep.subr.mxu0 0.0
    %698 = vmatpush1.msra.mxu0 0.0
    %699 = vmatprep.subr.mxu0 0.0
    %700 = vmatpush1.msra.mxu0 0.0
    %701 = vmatprep.subr.mxu0 0.0
    %702 = vmatpush1.msra.mxu0 0.0
    %703 = vmatprep.subr.mxu0 0.0
    %704 = vmatpush1.msra.mxu0 0.0
    %705 = vmatprep.subr.mxu0 0.0
    %706 = vmatpush1.msra.mxu0 %v24
    %707 = vmatprep.subr.mxu0 0.0
    %708 = vmatpush1.msra.mxu0 %v23
    %709 = vmatprep.subr.mxu0 0.0
    %710 = vmatpush1.msra.mxu0 %v22
    %711 = vmatprep.subr.mxu0 0.0
    %712 = vmatpush1.msra.mxu0 %v21
    %713 = vmatprep.subr.mxu0 0.0
    %714 = vmatpush2.msra.mxu0 0.0
    %715 = vmatprep.subr.mxu0 0.0
    %716 = vmatpush2.msra.mxu0 0.0
    %717 = vmatprep.subr.mxu0 0.0
    %718 = vmatpush2.msra.mxu0 0.0
    %719 = vmatprep.subr.mxu0 0.0
    %720 = vmatpush2.msra.mxu0 0.0
    %721 = vmatprep.subr.mxu0 0.0
    %722 = vmatpush2.msra.mxu0 0.0
    %723 = vmatprep.subr.mxu0 0.0
    %724 = vmatpush2.msra.mxu0 0.0
    %725 = vmatprep.subr.mxu0 0.0
    %726 = vmatpush2.msra.mxu0 0.0
    %727 = vmatprep.subr.mxu0 0.0
    %728 = vmatpush2.msra.mxu0 0.0
    %729 = vmatprep.subr.mxu0 0.0
    %730 = vmatpush2.msra.mxu0 0.0
    %731 = vmatprep.subr.mxu0 0.0
    %732 = vmatpush2.msra.mxu0 0.0
    %733 = vmatprep.subr.mxu0 0.0
    %734 = vmatpush2.msra.mxu0 0.0
    %735 = vmatprep.subr.mxu0 0.0
    %736 = vmatpush2.msra.mxu0 0.0
    %737 = vmatprep.subr.mxu0 0.0
    %738 = vmatpush2.msra.mxu0 0.0
    %739 = vmatprep.subr.mxu0 0.0
    %740 = vmatpush2.msra.mxu0 0.0
    %741 = vmatprep.subr.mxu0 0.0
    %742 = vmatpush2.msra.mxu0 0.0
    %743 = vmatprep.subr.mxu0 0.0
    %744 = vmatpush2.msra.mxu0 0.0
    %745 = vmatprep.mubr.f32.mxu0 0.0
    %746 = vmatmul.mubr.f32.gmra.mxu0 %v679
    %v747 = vpop.f32.mrf.mxu0
    %v748 = vadd.f32 0.0, %v747
    %v749 = vpop.f32.mrf.mxu0
    %750 = vdwg.mxu0
    %v751 = vadd.f32 %v675, %v748
    %v752 = vxor.u32 %v751, 2147483648
    %v753 = vmul.f32 %v752, 1.442695
    %v754 = vpow.pop %v753
    %v755 = vadd.f32 %v754, 1.0
    %v756 = vrcp.pop %v755
    %v757 = vmul.f32 1.0, %v756
    %v758 = vadd.f32 %v748, %v114
    %760 = vrot.lane.b32.xlu0 %v758, 64
    %v761 = vpop.permute.xlu0 %760
    %v763 = vmul.f32 %v757, %v761
    %765 = vrot.lane.b32.xlu0 %v763, 64
    %v766 = vpop.permute.xlu0 %765
    %v768 = vadd.f32 %v675, %v766
    %v769 = vtanh.pop %v768
    %v770 = vsub.f32 %v673, %v769
    %772 = vrot.lane.b32.xlu0 %v770, 96
    %v773 = vpop.permute.xlu0 %772
    %v775 = vmul.f32 %v757, %v773
    %777 = vrot.lane.b32.xlu0 %v775, 32
    %v778 = vpop.permute.xlu0 %777
    %v780 = vadd.f32 %v769, %v778
    %s781 = scalar_lea.vmem %s0, 14
    %v782 = vld [vmem:[%s781] sm:$0x3]
    %784 = vrot.lane.b32.xlu0 %v780, 64
    %v785 = vpop.permute.xlu0 %784
    %v786 = vsel %vm27, %v785, 0
    %788 = vmatprep.subr.mxu0 0.0
    %789 = vmatpush1.msra.mxu0 0.0
    %790 = vmatprep.subr.mxu0 0.0
    %791 = vmatpush1.msra.mxu0 0.0
    %792 = vmatprep.subr.mxu0 0.0
    %793 = vmatpush1.msra.mxu0 0.0
    %794 = vmatprep.subr.mxu0 0.0
    %795 = vmatpush1.msra.mxu0 0.0
    %796 = vmatprep.subr.mxu0 0.0
    %797 = vmatpush1.msra.mxu0 0.0
    %798 = vmatprep.subr.mxu0 0.0
    %799 = vmatpush1.msra.mxu0 0.0
    %800 = vmatprep.subr.mxu0 0.0
    %801 = vmatpush1.msra.mxu0 0.0
    %802 = vmatprep.subr.mxu0 0.0
    %803 = vmatpush1.msra.mxu0 0.0
    %804 = vmatprep.subr.mxu0 0.0
    %805 = vmatpush1.msra.mxu0 0.0
    %806 = vmatprep.subr.mxu0 0.0
    %807 = vmatpush1.msra.mxu0 0.0
    %808 = vmatprep.subr.mxu0 0.0
    %809 = vmatpush1.msra.mxu0 0.0
    %810 = vmatprep.subr.mxu0 0.0
    %811 = vmatpush1.msra.mxu0 0.0
    %812 = vmatprep.subr.mxu0 0.0
    %813 = vmatpush1.msra.mxu0 %v24
    %814 = vmatprep.subr.mxu0 0.0
    %815 = vmatpush1.msra.mxu0 %v23
    %816 = vmatprep.subr.mxu0 0.0
    %817 = vmatpush1.msra.mxu0 %v22
    %818 = vmatprep.subr.mxu0 0.0
    %819 = vmatpush1.msra.mxu0 %v21
    %820 = vmatprep.subr.mxu0 0.0
    %821 = vmatpush2.msra.mxu0 0.0
    %822 = vmatprep.subr.mxu0 0.0
    %823 = vmatpush2.msra.mxu0 0.0
    %824 = vmatprep.subr.mxu0 0.0
    %825 = vmatpush2.msra.mxu0 0.0
    %826 = vmatprep.subr.mxu0 0.0
    %827 = vmatpush2.msra.mxu0 0.0
    %828 = vmatprep.subr.mxu0 0.0
    %829 = vmatpush2.msra.mxu0 0.0
    %830 = vmatprep.subr.mxu0 0.0
    %831 = vmatpush2.msra.mxu0 0.0
    %832 = vmatprep.subr.mxu0 0.0
    %833 = vmatpush2.msra.mxu0 0.0
    %834 = vmatprep.subr.mxu0 0.0
    %835 = vmatpush2.msra.mxu0 0.0
    %836 = vmatprep.subr.mxu0 0.0
    %837 = vmatpush2.msra.mxu0 0.0
    %838 = vmatprep.subr.mxu0 0.0
    %839 = vmatpush2.msra.mxu0 0.0
    %840 = vmatprep.subr.mxu0 0.0
    %841 = vmatpush2.msra.mxu0 0.0
    %842 = vmatprep.subr.mxu0 0.0
    %843 = vmatpush2.msra.mxu0 0.0
    %844 = vmatprep.subr.mxu0 0.0
    %845 = vmatpush2.msra.mxu0 0.0
    %846 = vmatprep.subr.mxu0 0.0
    %847 = vmatpush2.msra.mxu0 0.0
    %848 = vmatprep.subr.mxu0 0.0
    %849 = vmatpush2.msra.mxu0 0.0
    %850 = vmatprep.subr.mxu0 0.0
    %851 = vmatpush2.msra.mxu0 0.0
    %852 = vmatprep.mubr.f32.mxu0 0.0
    %853 = vmatmul.mubr.f32.gmra.mxu0 %v786
    %v854 = vpop.f32.mrf.mxu0
    %v855 = vadd.f32 0.0, %v854
    %v856 = vpop.f32.mrf.mxu0
    %857 = vdwg.mxu0
    %v858 = vadd.f32 %v782, %v855
    %v859 = vxor.u32 %v858, 2147483648
    %v860 = vmul.f32 %v859, 1.442695
    %v861 = vpow.pop %v860
    %v862 = vadd.f32 %v861, 1.0
    %v863 = vrcp.pop %v862
    %v864 = vmul.f32 1.0, %v863
    %v865 = vadd.f32 %v855, %v114
    %867 = vrot.lane.b32.xlu0 %v865, 64
    %v868 = vpop.permute.xlu0 %867
    %v870 = vmul.f32 %v864, %v868
    %872 = vrot.lane.b32.xlu0 %v870, 64
    %v873 = vpop.permute.xlu0 %872
    %v875 = vadd.f32 %v782, %v873
    %v876 = vtanh.pop %v875
    %v877 = vsub.f32 %v780, %v876
    %879 = vrot.lane.b32.xlu0 %v877, 96
    %v880 = vpop.permute.xlu0 %879
    %v882 = vmul.f32 %v864, %v880
    %884 = vrot.lane.b32.xlu0 %v882, 32
    %v885 = vpop.permute.xlu0 %884
    %v887 = vadd.f32 %v876, %v885
    %v888 = vld [vmem:[%s3] sm:$0xff]
    %v889 = vld [vmem:[%s3 + $0x8] sm:$0xff]
    %v890 = vld [vmem:[%s3 + $0x10] sm:$0xff]
    %v891 = vld [vmem:[%s3 + $0x18] sm:$0xff]
    %v892 = vld [vmem:[%s4] sm:$0x1]
    %v894 = vlaneseq
    %v895 = vshrl.u32 %v894, 7
    %v896 = vsub.s32 0, %v895
    %v897 = vrot.slane %v892, %v896
    %900 = vrot.lane.b32.xlu0 %v887, 64
    %v901 = vpop.permute.xlu0 %900
    %v902 = vsel %vm27, %v901, 0
    %904 = vmatprep.subr.mxu0 0.0
    %905 = vmatpush1.msra.mxu0 0.0
    %906 = vmatprep.subr.mxu0 0.0
    %907 = vmatpush1.msra.mxu0 0.0
    %908 = vmatprep.subr.mxu0 0.0
    %909 = vmatpush1.msra.mxu0 0.0
    %910 = vmatprep.subr.mxu0 0.0
    %911 = vmatpush1.msra.mxu0 0.0
    %912 = vmatprep.subr.mxu0 0.0
    %913 = vmatpush1.msra.mxu0 0.0
    %914 = vmatprep.subr.mxu0 0.0
    %915 = vmatpush1.msra.mxu0 0.0
    %916 = vmatprep.subr.mxu0 0.0
    %917 = vmatpush1.msra.mxu0 0.0
    %918 = vmatprep.subr.mxu0 0.0
    %919 = vmatpush1.msra.mxu0 0.0
    %920 = vmatprep.subr.mxu0 0.0
    %921 = vmatpush1.msra.mxu0 0.0
    %922 = vmatprep.subr.mxu0 0.0
    %923 = vmatpush1.msra.mxu0 0.0
    %924 = vmatprep.subr.mxu0 0.0
    %925 = vmatpush1.msra.mxu0 0.0
    %926 = vmatprep.subr.mxu0 0.0
    %927 = vmatpush1.msra.mxu0 0.0
    %928 = vmatprep.subr.mxu0 0.0
    %929 = vmatpush1.msra.mxu0 %v891
    %930 = vmatprep.subr.mxu0 0.0
    %931 = vmatpush1.msra.mxu0 %v890
    %932 = vmatprep.subr.mxu0 0.0
    %933 = vmatpush1.msra.mxu0 %v889
    %934 = vmatprep.subr.mxu0 0.0
    %935 = vmatpush1.msra.mxu0 %v888
    %936 = vmatprep.subr.mxu0 0.0
    %937 = vmatpush2.msra.mxu0 0.0
    %938 = vmatprep.subr.mxu0 0.0
    %939 = vmatpush2.msra.mxu0 0.0
    %940 = vmatprep.subr.mxu0 0.0
    %941 = vmatpush2.msra.mxu0 0.0
    %942 = vmatprep.subr.mxu0 0.0
    %943 = vmatpush2.msra.mxu0 0.0
    %944 = vmatprep.subr.mxu0 0.0
    %945 = vmatpush2.msra.mxu0 0.0
    %946 = vmatprep.subr.mxu0 0.0
    %947 = vmatpush2.msra.mxu0 0.0
    %948 = vmatprep.subr.mxu0 0.0
    %949 = vmatpush2.msra.mxu0 0.0
    %950 = vmatprep.subr.mxu0 0.0
    %951 = vmatpush2.msra.mxu0 0.0
    %952 = vmatprep.subr.mxu0 0.0
    %953 = vmatpush2.msra.mxu0 0.0
    %954 = vmatprep.subr.mxu0 0.0
    %955 = vmatpush2.msra.mxu0 0.0
    %956 = vmatprep.subr.mxu0 0.0
    %957 = vmatpush2.msra.mxu0 0.0
    %958 = vmatprep.subr.mxu0 0.0
    %959 = vmatpush2.msra.mxu0 0.0
    %960 = vmatprep.subr.mxu0 0.0
    %961 = vmatpush2.msra.mxu0 0.0
    %962 = vmatprep.subr.mxu0 0.0
    %963 = vmatpush2.msra.mxu0 0.0
    %964 = vmatprep.subr.mxu0 0.0
    %965 = vmatpush2.msra.mxu0 0.0
    %966 = vmatprep.subr.mxu0 0.0
    %967 = vmatpush2.msra.mxu0 0.0
    %968 = vmatprep.mubr.f32.mxu0 0.0
    %969 = vmatmul.mubr.f32.gmra.mxu0 %v902
    %v970 = vpop.f32.mrf.mxu0
    %v971 = vadd.f32 %v897, %v970
    %v972 = vpop.f32.mrf.mxu0
    %973 = vdwg.mxu0
    %vm974 = vcmask 25600
    %975 = vst.msk [vmem:[#allocation2] sm:$0x3] %vm974, %v971
    // Predicated region
    $region22: #{gru_model_forward.1} parent=1 // pred_check
      _
    $region23: #{gru_model_forward.1} parent=1 // pred_check_branch
      %977 = sbr.rel (0) target = $region25
    $region24: #{gru_model_forward.1} parent=1 // pred_region
      %s979 = ssub.s32 32, 32
      %980 = vsyncadd [#allocation3], %s979
      %s982 = sshll.u32 [#allocation2], 4
      %s983 = int_to_ptr.vmem [resolvable:$true] %s982
      %985 = dma.vmem_to_hbm [thread:$0]  %s983, 32, %s5, [#allocation3]
    $region25: #{gru_model_forward.1} parent=1 // pred_fallthru
      _
    // Predicated region
    $region26: #{gru_model_forward.1} parent=1 // pred_check
      _
    $region27: #{gru_model_forward.1} parent=1 // pred_check_branch
      %987 = sbr.rel (0) target = $region29
    $region28: #{gru_model_forward.1} parent=1 // pred_region
      %988 = dma.done [#allocation3], 32
    $region29: #{gru_model_forward.1} parent=1 // pred_fallthru
      _
    %989 = vsyncpa [#allocation3], 1

</llo_original>
